<compile_context>
chip_gen: v5e
topology: v5e:2x2
jax: 0.10.0
libtpu: 0.0.40
codegen_flags: <defaults>
</compile_context>

<pallas_src>
import functools
import math

import jax
import jax.numpy as jnp
import numpy as np
from jax import lax
from jax.experimental import pallas as pl
from jax.experimental.pallas import tpu as pltpu


def _round_up(n, m):
    return -(-n // m) * m


def _choose_b_tile(B, max_tile):
    # Multiple of 128 (lane-dense output blocks), as large as possible to
    # amortize per-grid-step overhead, but ~B/2 for small B so the "parallel"
    # batch axis has >= 2 steps (v7x megacore sharding).
    return max(128, min(_round_up(max_tile, 128), _round_up(-(-B // 2), 128)))


def _qvalue_kernel(obs_ref, act_ref, p_ref, q_ref, *, dims):
    (obs_dim, act_dim, H1, H2,
     o_w1o, o_w1a, o_b1, o_w2, o_b2, o_w3, o_b3) = dims

    obs = obs_ref[...]                                  # (b_tile, obs_dim) f32/bf16
    act = act_ref[...]                                  # (b_tile, act_dim)
    cdt = obs.dtype

    # Static, tile-aligned slices of the packed parameter slab (always f32).
    w1o = p_ref[o_w1o:o_w1o + H1, 0:obs_dim]            # (H1, obs_dim)
    w1a = p_ref[o_w1a:o_w1a + H1, 0:act_dim]            # (H1, act_dim)
    b1  = p_ref[o_b1:o_b1 + H1, 0:1]                    # (H1, 1)
    w2  = p_ref[o_w2:o_w2 + H2, 0:H1]                   # (H2, H1)
    b2  = p_ref[o_b2:o_b2 + H2, 0:1]                    # (H2, 1)
    w3  = p_ref[o_w3:o_w3 + H2, 0:1]                    # (H2, 1)
    b3  = p_ref[o_b3:o_b3 + 1, 0:1]                     # (1, 1)

    # Layer 1: contract the feature axis of BOTH operands -> (H1, b_tile).
    # This is W1 @ cat(obs, act).T without materializing the concat, and puts
    # the batch dim on lanes for everything downstream.
    dn = (((1,), (1,)), ((), ()))
    z1 = (lax.dot_general(w1o.astype(cdt), obs, dn,
                          preferred_element_type=jnp.float32)
          + lax.dot_general(w1a.astype(cdt), act, dn,
                            preferred_element_type=jnp.float32)
          + b1)
    h1 = jnp.tanh(z1)                                   # (H1, b_tile) f32

    # Layer 2 (f32 MXU; elementwise stays f32 -> fine on v5e too).
    h2 = jnp.tanh(jnp.dot(w2, h1, preferred_element_type=jnp.float32) + b2)

    # Head Linear(H2 -> 1): VPU multiply + sublane reduce (no N=1 MXU pass).
    q = jnp.sum(h2 * w3, axis=0, keepdims=True) + b3    # (1, b_tile)
    q_ref[...] = q.astype(q_ref.dtype)


def qvalue_pallas(obs, act, params, *, b_tile=None, max_b_tile=2048):
    """QValue.forward: q = mlp(cat([obs, act], -1)) squeezed to shape (B,)."""
    B, obs_dim = obs.shape
    Ba, act_dim = act.shape
    assert Ba == B
    w1, b1 = params["w1"], params["b1"]      # (H1, obs+act), (H1,)
    w2, b2 = params["w2"], params["b2"]      # (H2, H1),      (H2,)
    w3, b3 = params["w3"], params["b3"]      # (1,  H2),      (1,)
    H1, H2 = w1.shape[0], w2.shape[0]
    assert w1.shape[1] == obs_dim + act_dim and w3.shape == (1, H2)

    if b_tile is None:
        b_tile = _choose_b_tile(B, max_b_tile)
    assert b_tile % 128 == 0

    # --- pack the 7 tiny parameter tensors into one f32 slab ----------------
    # Every block starts at column 0 and at an 8-aligned row, so all in-kernel
    # static slices are sublane/lane aligned.
    o_w1o = 0
    o_w1a = o_w1o + _round_up(H1, 8)
    o_b1  = o_w1a + _round_up(H1, 8)
    o_w2  = o_b1  + _round_up(H1, 8)
    o_b2  = o_w2  + _round_up(H2, 8)
    o_w3  = o_b2  + _round_up(H2, 8)
    o_b3  = o_w3  + _round_up(H2, 8)
    rows  = o_b3 + 8
    cols  = max(obs_dim, act_dim, H1, 1)

    f32 = jnp.float32
    slab = jnp.zeros((rows, cols), f32)
    slab = slab.at[o_w1o:o_w1o + H1, :obs_dim].set(w1[:, :obs_dim].astype(f32))
    slab = slab.at[o_w1a:o_w1a + H1, :act_dim].set(w1[:, obs_dim:].astype(f32))
    slab = slab.at[o_b1:o_b1 + H1, 0].set(b1.astype(f32))
    slab = slab.at[o_w2:o_w2 + H2, :H1].set(w2.astype(f32))
    slab = slab.at[o_b2:o_b2 + H2, 0].set(b2.astype(f32))
    slab = slab.at[o_w3:o_w3 + H2, 0].set(w3[0].astype(f32))
    slab = slab.at[o_b3, 0].set(b3[0].astype(f32))

    dims = (obs_dim, act_dim, H1, H2,
            o_w1o, o_w1a, o_b1, o_w2, o_b2, o_w3, o_b3)
    kernel = functools.partial(_qvalue_kernel, dims=dims)

    in_bytes = obs.dtype.itemsize
    cost = pl.CostEstimate(
        flops=2 * B * (H1 * (obs_dim + act_dim) + H2 * H1 + H2),
        transcendentals=B * (H1 + H2),
        bytes_accessed=int(B * (obs_dim + act_dim) * in_bytes
                           + 4 * B + 4 * slab.size),
    )

    q = pl.pallas_call(
        kernel,
        out_shape=jax.ShapeDtypeStruct((1, B), jnp.float32),
        grid_spec=pltpu.PrefetchScalarGridSpec(
            num_scalar_prefetch=0,
            grid=(pl.cdiv(B, b_tile),),
            in_specs=[
                pl.BlockSpec((b_tile, obs_dim), lambda i: (i, 0)),  # obs (natural layout)
                pl.BlockSpec((b_tile, act_dim), lambda i: (i, 0)),  # act (natural layout)
                pl.BlockSpec((rows, cols), lambda i: (0, 0)),       # packed params, resident
            ],
            out_specs=pl.BlockSpec((1, b_tile), lambda i: (0, i)),  # lane-dense output slab
        ),
        compiler_params=pltpu.CompilerParams(
            dimension_semantics=("parallel",)),                     # megacore on v7x
        cost_estimate=cost,
    )(obs, act, slab)

    # torch.squeeze(q, -1) -> (B,)
    return q[0]


def _linear_init(key, fan_in, fan_out):
    """Deterministic nn.Linear-style init, PyTorch (out, in) weight layout."""
    kw, kb = jax.random.split(key)
    bound = 1.0 / math.sqrt(fan_in)
    w = jax.random.uniform(kw, (fan_out, fan_in), jnp.float32, -bound, bound)
    b = jax.random.uniform(kb, (fan_out,), jnp.float32, -bound, bound)
    return w, b


def _reference(obs, act, params):
    """Pure-JAX reference of QValue.forward for the correctness check."""
    x = jnp.concatenate([obs, act], axis=-1)
    h1 = jnp.tanh(x @ params["w1"].T + params["b1"])
    h2 = jnp.tanh(h1 @ params["w2"].T + params["b2"])
    q = h2 @ params["w3"].T + params["b3"]
    return q[:, 0]


if __name__ == "__main__":
    # B=300 with the adaptive tile (256) exercises the multi-tile path: a
    # 2-step "parallel" grid with one full tile and one ragged edge tile.
    B, OBS, ACT = 300, 16, 8
    H1, H2 = 32, 32                         # hidden_sizes=(32, 32), activation=Tanh

    key = jax.random.PRNGKey(0)
    k_obs, k_act, k1, k2, k3 = jax.random.split(key, 5)

    w1, b1 = _linear_init(k1, OBS + ACT, H1)
    w2, b2 = _linear_init(k2, H1, H2)
    w3, b3 = _linear_init(k3, H2, 1)
    params = dict(w1=w1, b1=b1, w2=w2, b2=b2, w3=w3, b3=b3)

    obs = jax.random.normal(k_obs, (B, OBS), jnp.float32)
    act = jax.random.normal(k_act, (B, ACT), jnp.float32)

    # f32 activations (tight tolerance).
    q = qvalue_pallas(obs, act, params)
    jax.block_until_ready(q)
    q_ref = _reference(obs, act, params)
    np.testing.assert_allclose(np.asarray(q), np.asarray(q_ref),
                               rtol=1e-4, atol=1e-4)

    # bf16 activations (halved input HBM bytes, native v6e/v7x MXU dtype);
    # accumulation / bias / tanh stay f32 in the kernel.
    obs_bf = obs.astype(jnp.bfloat16)
    act_bf = act.astype(jnp.bfloat16)
    q_bf = qvalue_pallas(obs_bf, act_bf, params)
    jax.block_until_ready(q_bf)
    q_bf_ref = _reference(obs_bf.astype(jnp.float32),
                          act_bf.astype(jnp.float32), params)
    np.testing.assert_allclose(np.asarray(q_bf), np.asarray(q_bf_ref),
                               rtol=2e-2, atol=2e-2)

    print("KERNEL_OK")
</pallas_src>

<mosaic_0001>
module attributes {stable_mosaic.version = 11 : i64} {
  func.func @_qvalue_kernel(%arg0: i32, %arg1: memref<256x16xf32, #tpu.memory_space<vmem>>, %arg2: memref<256x8xf32, #tpu.memory_space<vmem>>, %arg3: memref<200x32xf32, #tpu.memory_space<vmem>>, %arg4: memref<1x256xf32, #tpu.memory_space<vmem>>) attributes {dimension_semantics = [#tpu.dimension_semantics<parallel>], iteration_bounds = array<i64: 2>, scalar_prefetch = 0 : i64, scratch_operands = 0 : i64, tpu.core_type = #tpu.core_type<tc>, window_params = [{transform_indices = @transform_0, window_bounds = array<i64: 256, 16>}, {transform_indices = @transform_1, window_bounds = array<i64: 256, 8>}, {pipeline_mode = #tpu.pipeline_mode<synchronous>, transform_indices = @transform_2, window_bounds = array<i64: 200, 32>}, {transform_indices = @transform_3, window_bounds = array<i64: 1, 256>}]} {
    %c0 = arith.constant 0 : index
    %c0_0 = arith.constant 0 : index
    %0 = vector.load %arg1[%c0, %c0_0] : memref<256x16xf32, #tpu.memory_space<vmem>>, vector<256x16xf32>
    %c0_1 = arith.constant 0 : index
    %c0_2 = arith.constant 0 : index
    %1 = vector.load %arg2[%c0_1, %c0_2] : memref<256x8xf32, #tpu.memory_space<vmem>>, vector<256x8xf32>
    %c0_3 = arith.constant 0 : index
    %c0_4 = arith.constant 0 : index
    %2 = vector.load %arg3[%c0_3, %c0_4] : memref<200x32xf32, #tpu.memory_space<vmem>>, vector<32x16xf32>
    %c32 = arith.constant 32 : index
    %c0_5 = arith.constant 0 : index
    %3 = vector.load %arg3[%c32, %c0_5] : memref<200x32xf32, #tpu.memory_space<vmem>>, vector<32x8xf32>
    %c64 = arith.constant 64 : index
    %c0_6 = arith.constant 0 : index
    %4 = vector.load %arg3[%c64, %c0_6] : memref<200x32xf32, #tpu.memory_space<vmem>>, vector<32x1xf32>
    %c96 = arith.constant 96 : index
    %c0_7 = arith.constant 0 : index
    %5 = vector.load %arg3[%c96, %c0_7] : memref<200x32xf32, #tpu.memory_space<vmem>>, vector<32x32xf32>
    %c128 = arith.constant 128 : index
    %c0_8 = arith.constant 0 : index
    %6 = vector.load %arg3[%c128, %c0_8] : memref<200x32xf32, #tpu.memory_space<vmem>>, vector<32x1xf32>
    %c160 = arith.constant 160 : index
    %c0_9 = arith.constant 0 : index
    %7 = vector.load %arg3[%c160, %c0_9] : memref<200x32xf32, #tpu.memory_space<vmem>>, vector<32x1xf32>
    %c192 = arith.constant 192 : index
    %c0_10 = arith.constant 0 : index
    %8 = vector.load %arg3[%c192, %c0_10] : memref<200x32xf32, #tpu.memory_space<vmem>>, vector<1x1xf32>
    %cst = arith.constant dense<0.000000e+00> : vector<32x256xf32>
    %9 = tpu.matmul %2, %0, %cst {dimension_numbers = #tpu.dot_dimension_numbers<[1], [1], [0], [0], [0, 0, 1, 0], [], []>} : vector<32x16xf32>, vector<256x16xf32>, vector<32x256xf32> -> vector<32x256xf32>
    %cst_11 = arith.constant dense<0.000000e+00> : vector<32x256xf32>
    %10 = tpu.matmul %3, %1, %cst_11 {dimension_numbers = #tpu.dot_dimension_numbers<[1], [1], [0], [0], [0, 0, 1, 0], [], []>} : vector<32x8xf32>, vector<256x8xf32>, vector<32x256xf32> -> vector<32x256xf32>
    %11 = arith.addf %9, %10 : vector<32x256xf32>
    %12 = vector.broadcast %4 : vector<32x1xf32> to vector<32x256xf32>
    %13 = arith.addf %11, %12 : vector<32x256xf32>
    %14 = math.tanh %13 : vector<32x256xf32>
    %cst_12 = arith.constant dense<0.000000e+00> : vector<32x256xf32>
    %15 = tpu.matmul %5, %14, %cst_12 {dimension_numbers = #tpu.dot_dimension_numbers<[1], [0], [0], [1], [0, 0, 1, 1], [], []>} : vector<32x32xf32>, vector<32x256xf32>, vector<32x256xf32> -> vector<32x256xf32>
    %16 = vector.broadcast %6 : vector<32x1xf32> to vector<32x256xf32>
    %17 = arith.addf %15, %16 : vector<32x256xf32>
    %18 = math.tanh %17 : vector<32x256xf32>
    %19 = vector.broadcast %7 : vector<32x1xf32> to vector<32x256xf32>
    %20 = arith.mulf %18, %19 : vector<32x256xf32>
    %cst_13 = arith.constant dense<0.000000e+00> : vector<256xf32>
    %21 = vector.multi_reduction <add>, %20, %cst_13 [0] : vector<32x256xf32> to vector<256xf32>
    %22 = vector.shape_cast %21 : vector<256xf32> to vector<1x256xf32>
    %23 = vector.broadcast %8 : vector<1x1xf32> to vector<1x256xf32>
    %24 = arith.addf %22, %23 : vector<1x256xf32>
    %c0_14 = arith.constant 0 : index
    %c0_15 = arith.constant 0 : index
    %25 = vector.load %arg4[%c0_14, %c0_15] : memref<1x256xf32, #tpu.memory_space<vmem>>, vector<1x256xf32>
    tpu.vector_store %arg4[%c0_14, %c0_15], %24 {strides = array<i32>} : memref<1x256xf32, #tpu.memory_space<vmem>>, vector<1x256xf32>,
    return
  }
  func.func @transform_0(%arg0: i32) -> (i32, i32) {
    %c0_i32 = arith.constant 0 : i32
    %c0_i32_0 = arith.constant 0 : i32
    return %arg0, %c0_i32 : i32, i32
  }
  func.func @transform_1(%arg0: i32) -> (i32, i32) {
    %c0_i32 = arith.constant 0 : i32
    %c0_i32_0 = arith.constant 0 : i32
    return %arg0, %c0_i32 : i32, i32
  }
  func.func @transform_2(%arg0: i32) -> (i32, i32) {
    %c0_i32 = arith.constant 0 : i32
    %c0_i32_0 = arith.constant 0 : i32
    %c0_i32_1 = arith.constant 0 : i32
    return %c0_i32, %c0_i32_0 : i32, i32
  }
  func.func @transform_3(%arg0: i32) -> (i32, i32) {
    %c0_i32 = arith.constant 0 : i32
    %c0_i32_0 = arith.constant 0 : i32
    return %c0_i32, %arg0 : i32, i32
  }
}

</mosaic_0001>

<llo_original>
// kernel: tpu_custom_call.1
$region0: #{tpu_custom_call.1}
  #allocation0 [shape = 'u32[]', space=smem, size = 0x4, offset = 0x4, fixed_abs, tag = 'smem constant byte address 0x4 - core index']
  #allocation1 [shape = 'u32[72,128]{1,0:T(1,128)}', space=vmem, size = 0x9000, scoped, tag = 'internal scratch']
  %s0 = inlined_call_operand.vmem [shape: f32[300,16], index: 0, kind: input, shape index: {}]
  %s1 = inlined_call_operand.vmem [shape: f32[300,8], index: 1, kind: input, shape index: {}]
  %s2 = inlined_call_operand.vmem [shape: f32[200,32], index: 2, kind: input, shape index: {}]
  %s3 = inlined_call_operand.hbm [shape: f32[1,300], index: 3, kind: output, shape index: {}]
  %s4 = sld [smem:[#allocation0]]
  $region45: #{tpu_custom_call.1} parent=0
    _
  %s6 = ssub.s32 1, %s4
  %s7 = scalar_select 0, %s6, %s4
  $region1: #{tpu_custom_call.1} parent=0
    #allocation2 [shape = 'u8[2048]{0}', space=vmem, size = 0x800, scoped, tag = 'output window, operand 0']
    #allocation3 [shape = 's32[2]{0}', space=sflag, size = 0x8, scoped, tag = 'scoped memory for tpu_custom_call.1']
    %8 = vsyncpa [#allocation3], 0
    %s9 = scalar_lea.sflag [#allocation3], 1
    %10 = vsyncpa %s9, 0
    loop: start=0, step=1, limit=4
    $region2: #{tpu_custom_call.1} parent=1 // loop_pre_header
      _
    $region3: #{tpu_custom_call.1} parent=1 // loop_header
      %s12 = sphi 0, %s16
      %p13 = scmp.ge.s32.totalorder %s12, 4
      %s22 = sphi 0, %s24
      %s25 = sphi 0, %s22
      %s26 = sphi 0, %s25
      %s42 = sphi 0, %s26
      %s48 = sphi 0, %s50
      %s51 = sphi 0, %s48
      %s52 = sphi 0, %s51
      %s68 = sphi 0, %s52
      %s72 = sphi 0, %s72
      %s74 = sphi 0, %s72
      %s75 = sphi 0, %s74
      %s89 = sphi 0, %s75
      %s95 = sphi 0, %s97
      %s98 = sphi 0, %s95
      %s99 = sphi 0, %s98
      %s115 = sphi 0, %s99
    $region4: #{tpu_custom_call.1} parent=1 // loop_header_branch
      %15 = sbr.rel (%p13) target = $region8
    $region5: #{tpu_custom_call.1} parent=1 // loop_body
      %s17 = ssub.s32 %s12, 1
      %s18 = ssub.s32 %s12, 2
      %s19 = sadd.s32 %s12, 1
      %s20 = ssub.s32 %s12, %s19
      %p21 = scmp.eq.s32.totalorder %s20, 0
      %s23 = sadd.s32 %s22, 1
      %s24 = scalar_select %p21, %s22, %s23
      %p27 = pneg %p21
      %p28 = scmp.eq.s32.totalorder %s12, 1
      %p29 = por %p27, %p28
      %p30 = scmp.ne.s32.totalorder %s22, %s25
      %p31 = scmp.eq.s32.totalorder %s12, 0
      %p32 = por %p30, %p31
      %p33 = scmp.ne.s32.totalorder %s22, %s25
      %p34 = scmp.eq.s32.totalorder %s17, 1
      %p35 = por %p33, %p34
      %p36 = scmp.ne.s32.totalorder %s25, %s26
      %p37 = scmp.eq.s32.totalorder %s17, 0
      %p38 = por %p36, %p37
      %p39 = scmp.ne.s32.totalorder %s25, %s26
      %p40 = scmp.eq.s32.totalorder %s18, 1
      %p41 = por %p39, %p40
      %p43 = scmp.ne.s32.totalorder %s26, %s42
      %p44 = scmp.eq.s32.totalorder %s18, 0
      %p45 = por %p43, %p44
      %s46 = ssub.s32 %s12, %s19
      %p47 = scmp.eq.s32.totalorder %s46, 0
      %s49 = sadd.s32 %s48, 1
      %s50 = scalar_select %p47, %s48, %s49
      %p53 = pneg %p47
      %p54 = scmp.eq.s32.totalorder %s12, 1
      %p55 = por %p53, %p54
      %p56 = scmp.ne.s32.totalorder %s48, %s51
      %p57 = scmp.eq.s32.totalorder %s12, 0
      %p58 = por %p56, %p57
      %p59 = scmp.ne.s32.totalorder %s48, %s51
      %p60 = scmp.eq.s32.totalorder %s17, 1
      %p61 = por %p59, %p60
      %p62 = scmp.ne.s32.totalorder %s51, %s52
      %p63 = scmp.eq.s32.totalorder %s17, 0
      %p64 = por %p62, %p63
      %p65 = scmp.ne.s32.totalorder %s51, %s52
      %p66 = scmp.eq.s32.totalorder %s18, 1
      %p67 = por %p65, %p66
      %p69 = scmp.ne.s32.totalorder %s52, %s68
      %p70 = scmp.eq.s32.totalorder %s18, 0
      %p71 = por %p69, %p70
      %s73 = sadd.s32 %s72, 1
      %p76 = scmp.eq.s32.totalorder %s12, 1
      %p77 = scmp.ne.s32.totalorder %s72, %s74
      %p78 = scmp.eq.s32.totalorder %s12, 0
      %p79 = por %p77, %p78
      %p80 = scmp.ne.s32.totalorder %s72, %s74
      %p81 = scmp.eq.s32.totalorder %s17, 1
      %p82 = por %p80, %p81
      %p83 = scmp.ne.s32.totalorder %s74, %s75
      %p84 = scmp.eq.s32.totalorder %s17, 0
      %p85 = por %p83, %p84
      %p86 = scmp.ne.s32.totalorder %s74, %s75
      %p87 = scmp.eq.s32.totalorder %s18, 1
      %p88 = por %p86, %p87
      %p90 = scmp.ne.s32.totalorder %s75, %s89
      %p91 = scmp.eq.s32.totalorder %s18, 0
      %p92 = por %p90, %p91
      %s93 = ssub.s32 %s12, %s19
      %p94 = scmp.eq.s32.totalorder %s93, 0
      %s96 = sadd.s32 %s95, 1
      %s97 = scalar_select %p94, %s95, %s96
      %p100 = pneg %p94
      %p101 = scmp.eq.s32.totalorder %s12, 1
      %p102 = por %p100, %p101
      %p103 = scmp.ne.s32.totalorder %s95, %s98
      %p104 = scmp.eq.s32.totalorder %s12, 0
      %p105 = por %p103, %p104
      %p106 = scmp.ne.s32.totalorder %s95, %s98
      %p107 = scmp.eq.s32.totalorder %s17, 1
      %p108 = por %p106, %p107
      %p109 = scmp.ne.s32.totalorder %s98, %s99
      %p110 = scmp.eq.s32.totalorder %s17, 0
      %p111 = por %p109, %p110
      %p112 = scmp.ne.s32.totalorder %s98, %s99
      %p113 = scmp.eq.s32.totalorder %s18, 1
      %p114 = por %p112, %p113
      %p116 = scmp.ne.s32.totalorder %s99, %s115
      %p117 = scmp.eq.s32.totalorder %s18, 0
      %p118 = por %p116, %p117
      %p119 = scmp.le.s32.totalorder 1, %s12
      %p120 = scmp.lt.s32.totalorder %s12, 3
      %p121 = pnand %p119, %p120
      %p122 = pneg %p121
      // Predicated region
      $region9: #{tpu_custom_call.1} parent=5 // pred_check
        _
      $region10: #{tpu_custom_call.1} parent=5 // pred_check_branch
        %124 = sbr.rel (%p121) target = $region12
      $region11: #{tpu_custom_call.1} parent=5 // pred_region
        %s125 = ssub.s32 %s12, 1
        // Predicated region
        $region13: #{tpu_custom_call.1} parent=11 // pred_check
          %p126 = pneg %p85
        $region14: #{tpu_custom_call.1} parent=11 // pred_check_branch
          %128 = sbr.rel (%p126) target = $region16
        $region15: #{tpu_custom_call.1} parent=11 // pred_region
          _
        $region16: #{tpu_custom_call.1} parent=11 // pred_fallthru
          _
      $region12: #{tpu_custom_call.1} parent=5 // pred_fallthru
        _
      %p129 = scmp.lt.s32.totalorder %s12, 2
      // Predicated region
      $region17: #{tpu_custom_call.1} parent=5 // pred_check
        %p130 = pneg %p129
      $region18: #{tpu_custom_call.1} parent=5 // pred_check_branch
        %132 = sbr.rel (%p130) target = $region20
      $region19: #{tpu_custom_call.1} parent=5 // pred_region
        // Predicated region
        $region21: #{tpu_custom_call.1} parent=19 // pred_check
          %p133 = pneg %p32
        $region22: #{tpu_custom_call.1} parent=19 // pred_check_branch
          %135 = sbr.rel (%p133) target = $region24
        $region23: #{tpu_custom_call.1} parent=19 // pred_region
          %s136 = smul.u32 32, %s12
          %s137 = ssub.s32 38, %s136
          %p138 = scmp.lt.s32.totalorder %s137, 32
          %s139 = scalar_select %p138, %s137, 32
          %s140 = smul.u32 8, %s139
          %p141 = scmp.lt.s32.totalorder %s136, 37
          %s142 = scalar_select %p141, %s136, 37
          %s143 = smul.addr %s142, 8
          %s144 = scalar_lea.vmem %s0, %s143
          %s145 = smul.u32 32, %s12
          %s146 = ssub.s32 38, %s145
          %p147 = scmp.lt.s32.totalorder %s146, 32
          %s148 = scalar_select %p147, %s146, 32
          %s149 = smul.u32 8, %s148
        $region24: #{tpu_custom_call.1} parent=19 // pred_fallthru
          _
        // Predicated region
        $region25: #{tpu_custom_call.1} parent=19 // pred_check
          %p150 = pneg %p58
        $region26: #{tpu_custom_call.1} parent=19 // pred_check_branch
          %152 = sbr.rel (%p150) target = $region28
        $region27: #{tpu_custom_call.1} parent=19 // pred_region
          %s153 = smul.u32 32, %s12
          %s154 = ssub.s32 38, %s153
          %p155 = scmp.lt.s32.totalorder %s154, 32
          %s156 = scalar_select %p155, %s154, 32
          %s157 = smul.u32 8, %s156
          %p158 = scmp.lt.s32.totalorder %s153, 37
          %s159 = scalar_select %p158, %s153, 37
          %s160 = smul.addr %s159, 8
          %s161 = scalar_lea.vmem %s1, %s160
          %s162 = smul.u32 32, %s12
          %s163 = ssub.s32 38, %s162
          %p164 = scmp.lt.s32.totalorder %s163, 32
          %s165 = scalar_select %p164, %s163, 32
          %s166 = smul.u32 8, %s165
        $region28: #{tpu_custom_call.1} parent=19 // pred_fallthru
          _
      $region20: #{tpu_custom_call.1} parent=5 // pred_fallthru
        _
      %p167 = scmp.le.s32.totalorder 1, %s12
      %p168 = scmp.lt.s32.totalorder %s12, 3
      %p169 = pnand %p167, %p168
      %p170 = pneg %p169
      // Predicated region
      $region29: #{tpu_custom_call.1} parent=5 // pred_check
        _
      $region30: #{tpu_custom_call.1} parent=5 // pred_check_branch
        %172 = sbr.rel (%p169) target = $region32
      $region31: #{tpu_custom_call.1} parent=5 // pred_region
        %s173 = ssub.s32 %s12, 1
        %s174 = smul.u32 32, %s17
        %s175 = ssub.s32 38, %s174
        %p176 = scmp.lt.s32.totalorder %s175, 32
        %s177 = scalar_select %p176, %s175, 32
        %s178 = smul.u32 8, %s177
        %p179 = scmp.lt.s32.totalorder %s174, 37
        %s180 = scalar_select %p179, %s174, 37
        %s181 = smul.addr %s180, 8
        %s182 = scalar_lea.vmem %s0, %s181
        %p183 = pneg %p38
        %p184 = pneg %p35
        %s185 = smul.u32 32, %s17
        %s186 = ssub.s32 38, %s185
        %p187 = scmp.lt.s32.totalorder %s186, 32
        %s188 = scalar_select %p187, %s186, 32
        %s189 = smul.u32 8, %s188
        %p190 = scmp.lt.s32.totalorder %s185, 37
        %s191 = scalar_select %p190, %s185, 37
        %s192 = smul.addr %s191, 8
        %s193 = scalar_lea.vmem %s1, %s192
        %p194 = pneg %p64
        %p195 = pneg %p61
        %p196 = pneg %p85
        %p197 = pneg %p82
        %p198 = pneg %p111
        %p199 = pneg %p108
        %s200 = sand.u32 %s98, 1
        %s201 = scalar_lea.sflag [#allocation3], %s200
        %s202 = sand.u32 %s98, 1
        %s203 = smul.addr %s202, 2
        %s204 = scalar_lea.vmem [#allocation2], %s203
        %s205 = smul.u32 32, %s17
        %s206 = ssub.s32 38, %s205
        %p207 = scmp.lt.s32.totalorder %s206, 32
        %s208 = scalar_select %p207, %s206, 32
        %s209 = smul.u32 8, %s208
        %p210 = scmp.lt.s32.totalorder %s205, 37
        %s211 = scalar_select %p210, %s205, 37
        %s212 = smul.addr %s211, 8
        %s213 = scalar_lea.vmem %s0, %s212
        %s214 = smul.u32 32, %s17
        %s215 = ssub.s32 38, %s214
        %p216 = scmp.lt.s32.totalorder %s215, 32
        %s217 = scalar_select %p216, %s215, 32
        %s218 = smul.u32 8, %s217
        %s219 = smul.u32 32, %s17
        %s220 = ssub.s32 38, %s219
        %p221 = scmp.lt.s32.totalorder %s220, 32
        %s222 = scalar_select %p221, %s220, 32
        %s223 = smul.u32 8, %s222
        %p224 = scmp.lt.s32.totalorder %s219, 37
        %s225 = scalar_select %p224, %s219, 37
        %s226 = smul.addr %s225, 8
        %s227 = scalar_lea.vmem %s1, %s226
        %s228 = smul.u32 32, %s17
        %s229 = ssub.s32 38, %s228
        %p230 = scmp.lt.s32.totalorder %s229, 32
        %s231 = scalar_select %p230, %s229, 32
        %s232 = smul.u32 8, %s231
        %s233 = smul.u32 2, %s17
        %s234 = ssub.s32 3, %s233
        %p235 = scmp.lt.s32.totalorder %s234, 2
        %s236 = scalar_select %p235, %s234, 2
        %v237 = vld [vmem:[%s213] sm:$0xff]
        %v238 = vld [vmem:[%s213 + $0x8] sm:$0xff]
        %v239 = vld [vmem:[%s213 + $0x10] sm:$0xff]
        %v240 = vld [vmem:[%s213 + $0x18] sm:$0xff]
        %v241 = vld [vmem:[%s213 + $0x20] sm:$0xff]
        %v242 = vld [vmem:[%s213 + $0x28] sm:$0xff]
        %v243 = vld [vmem:[%s213 + $0x30] sm:$0xff]
        %v244 = vld [vmem:[%s213 + $0x38] sm:$0xff]
        %v245 = vld [vmem:[%s213 + $0x40] sm:$0xff]
        %v246 = vld [vmem:[%s213 + $0x48] sm:$0xff]
        %v247 = vld [vmem:[%s213 + $0x50] sm:$0xff]
        %v248 = vld [vmem:[%s213 + $0x58] sm:$0xff]
        %v249 = vld [vmem:[%s213 + $0x60] sm:$0xff]
        %v250 = vld [vmem:[%s213 + $0x68] sm:$0xff]
        %v251 = vld [vmem:[%s213 + $0x70] sm:$0xff]
        %v252 = vld [vmem:[%s213 + $0x78] sm:$0xff]
        %v253 = vld [vmem:[%s213 + $0x80] sm:$0xff]
        %v254 = vld [vmem:[%s213 + $0x88] sm:$0xff]
        %v255 = vld [vmem:[%s213 + $0x90] sm:$0xff]
        %v256 = vld [vmem:[%s213 + $0x98] sm:$0xff]
        %v257 = vld [vmem:[%s213 + $0xa0] sm:$0xff]
        %v258 = vld [vmem:[%s213 + $0xa8] sm:$0xff]
        %v259 = vld [vmem:[%s213 + $0xb0] sm:$0xff]
        %v260 = vld [vmem:[%s213 + $0xb8] sm:$0xff]
        %v261 = vld [vmem:[%s213 + $0xc0] sm:$0xff]
        %v262 = vld [vmem:[%s213 + $0xc8] sm:$0xff]
        %v263 = vld [vmem:[%s213 + $0xd0] sm:$0xff]
        %v264 = vld [vmem:[%s213 + $0xd8] sm:$0xff]
        %v265 = vld [vmem:[%s213 + $0xe0] sm:$0xff]
        %v266 = vld [vmem:[%s213 + $0xe8] sm:$0xff]
        %v267 = vld [vmem:[%s213 + $0xf0] sm:$0xff]
        %v268 = vld [vmem:[%s213 + $0xf8] sm:$0xff]
        %v269 = vld [vmem:[%s227] sm:$0xff]
        %v270 = vld [vmem:[%s227 + $0x8] sm:$0xff]
        %v271 = vld [vmem:[%s227 + $0x10] sm:$0xff]
        %v272 = vld [vmem:[%s227 + $0x18] sm:$0xff]
        %v273 = vld [vmem:[%s227 + $0x20] sm:$0xff]
        %v274 = vld [vmem:[%s227 + $0x28] sm:$0xff]
        %v275 = vld [vmem:[%s227 + $0x30] sm:$0xff]
        %v276 = vld [vmem:[%s227 + $0x38] sm:$0xff]
        %v277 = vld [vmem:[%s227 + $0x40] sm:$0xff]
        %v278 = vld [vmem:[%s227 + $0x48] sm:$0xff]
        %v279 = vld [vmem:[%s227 + $0x50] sm:$0xff]
        %v280 = vld [vmem:[%s227 + $0x58] sm:$0xff]
        %v281 = vld [vmem:[%s227 + $0x60] sm:$0xff]
        %v282 = vld [vmem:[%s227 + $0x68] sm:$0xff]
        %v283 = vld [vmem:[%s227 + $0x70] sm:$0xff]
        %v284 = vld [vmem:[%s227 + $0x78] sm:$0xff]
        %v285 = vld [vmem:[%s227 + $0x80] sm:$0xff]
        %v286 = vld [vmem:[%s227 + $0x88] sm:$0xff]
        %v287 = vld [vmem:[%s227 + $0x90] sm:$0xff]
        %v288 = vld [vmem:[%s227 + $0x98] sm:$0xff]
        %v289 = vld [vmem:[%s227 + $0xa0] sm:$0xff]
        %v290 = vld [vmem:[%s227 + $0xa8] sm:$0xff]
        %v291 = vld [vmem:[%s227 + $0xb0] sm:$0xff]
        %v292 = vld [vmem:[%s227 + $0xb8] sm:$0xff]
        %v293 = vld [vmem:[%s227 + $0xc0] sm:$0xff]
        %v294 = vld [vmem:[%s227 + $0xc8] sm:$0xff]
        %v295 = vld [vmem:[%s227 + $0xd0] sm:$0xff]
        %v296 = vld [vmem:[%s227 + $0xd8] sm:$0xff]
        %v297 = vld [vmem:[%s227 + $0xe0] sm:$0xff]
        %v298 = vld [vmem:[%s227 + $0xe8] sm:$0xff]
        %v299 = vld [vmem:[%s227 + $0xf0] sm:$0xff]
        %v300 = vld [vmem:[%s227 + $0xf8] sm:$0xff]
        %v301 = vld [vmem:[%s2] sm:$0xff]
        %v302 = vld [vmem:[%s2 + $0x8] sm:$0xff]
        %v303 = vld [vmem:[%s2 + $0x10] sm:$0xff]
        %v304 = vld [vmem:[%s2 + $0x18] sm:$0xff]
        %v305 = vld [vmem:[%s2 + $0x20] sm:$0xff]
        %v306 = vld [vmem:[%s2 + $0x28] sm:$0xff]
        %v307 = vld [vmem:[%s2 + $0x30] sm:$0xff]
        %v308 = vld [vmem:[%s2 + $0x38] sm:$0xff]
        %v309 = vld [vmem:[%s2 + $0x40] sm:$0xff]
        %v310 = vld [vmem:[%s2 + $0x48] sm:$0xff]
        %v311 = vld [vmem:[%s2 + $0x50] sm:$0xff]
        %v312 = vld [vmem:[%s2 + $0x58] sm:$0xff]
        %v313 = vld [vmem:[%s2 + $0x60] sm:$0xff]
        %v314 = vld [vmem:[%s2 + $0x68] sm:$0xff]
        %v315 = vld [vmem:[%s2 + $0x70] sm:$0xff]
        %v316 = vld [vmem:[%s2 + $0x78] sm:$0xff]
        %v317 = vld [vmem:[%s2 + $0x80] sm:$0xff]
        %v318 = vld [vmem:[%s2 + $0x88] sm:$0xff]
        %v319 = vld [vmem:[%s2 + $0x90] sm:$0xff]
        %v320 = vld [vmem:[%s2 + $0x98] sm:$0xff]
        %v321 = vld [vmem:[%s2 + $0xa0] sm:$0xff]
        %v322 = vld [vmem:[%s2 + $0xa8] sm:$0xff]
        %v323 = vld [vmem:[%s2 + $0xb0] sm:$0xff]
        %v324 = vld [vmem:[%s2 + $0xb8] sm:$0xff]
        %v325 = vld [vmem:[%s2 + $0xc0] sm:$0x1]
        %vm326 = vcmask 64512
        %v328 = vsel %vm326, %v305, 0
        %v331 = vsel %vm326, %v306, 0
        %v334 = vsel %vm326, %v307, 0
        %v337 = vsel %vm326, %v308, 0
        %v340 = vsel %vm326, %v269, 0
        %v343 = vsel %vm326, %v270, 0
        %v346 = vsel %vm326, %v271, 0
        %v349 = vsel %vm326, %v272, 0
        %v352 = vsel %vm326, %v273, 0
        %v355 = vsel %vm326, %v274, 0
        %v358 = vsel %vm326, %v275, 0
        %v361 = vsel %vm326, %v276, 0
        %v364 = vsel %vm326, %v277, 0
        %v367 = vsel %vm326, %v278, 0
        %v370 = vsel %vm326, %v279, 0
        %v373 = vsel %vm326, %v280, 0
        %v376 = vsel %vm326, %v281, 0
        %v379 = vsel %vm326, %v282, 0
        %v382 = vsel %vm326, %v283, 0
        %v385 = vsel %vm326, %v284, 0
        %v388 = vsel %vm326, %v285, 0
        %v391 = vsel %vm326, %v286, 0
        %v394 = vsel %vm326, %v287, 0
        %v397 = vsel %vm326, %v288, 0
        %v400 = vsel %vm326, %v289, 0
        %v403 = vsel %vm326, %v290, 0
        %v406 = vsel %vm326, %v291, 0
        %v409 = vsel %vm326, %v292, 0
        %v412 = vsel %vm326, %v293, 0
        %v415 = vsel %vm326, %v294, 0
        %v418 = vsel %vm326, %v295, 0
        %v421 = vsel %vm326, %v296, 0
        %v424 = vsel %vm326, %v297, 0
        %v427 = vsel %vm326, %v298, 0
        %v430 = vsel %vm326, %v299, 0
        %v433 = vsel %vm326, %v300, 0
        %435 = vmatpush.xpose.msra.mxu0 %v385
        %436 = vmatpush.xpose.msra.mxu0 %v382
        %437 = vmatpush.xpose.msra.mxu0 %v379
        %438 = vmatpush.xpose.msra.mxu0 %v376
        %439 = vmatpush.xpose.msra.mxu0 %v373
        %440 = vmatpush.xpose.msra.mxu0 %v370
        %441 = vmatpush.xpose.msra.mxu0 %v367
        %442 = vmatpush.xpose.msra.mxu0 %v364
        %443 = vmatpush.xpose.msra.mxu0 %v361
        %444 = vmatpush.xpose.msra.mxu0 %v358
        %445 = vmatpush.xpose.msra.mxu0 %v355
        %446 = vmatpush.xpose.msra.mxu0 %v352
        %447 = vmatpush.xpose.msra.mxu0 %v349
        %448 = vmatpush.xpose.msra.mxu0 %v346
        %449 = vmatpush.xpose.msra.mxu0 %v343
        %450 = vmatpush.xpose.msra.mxu0 %v340
        %451 = vmatmul.f32.gmra.mxu0 %v328
        %v452 = vpop.f32.mrf.mxu0
        %v453 = vadd.f32 0.0, %v452
        %454 = vmatmul.f32.gmra.mxu0 %v331
        %v455 = vpop.f32.mrf.mxu0
        %v456 = vadd.f32 0.0, %v455
        %457 = vmatmul.f32.gmra.mxu0 %v334
        %v458 = vpop.f32.mrf.mxu0
        %v459 = vadd.f32 0.0, %v458
        %460 = vmatmul.f32.gmra.mxu0 %v337
        %v461 = vpop.f32.mrf.mxu0
        %v462 = vadd.f32 0.0, %v461
        %463 = vdwg.mxu0
        %464 = vmatpush.xpose.msra.mxu0 %v433
        %465 = vmatpush.xpose.msra.mxu0 %v430
        %466 = vmatpush.xpose.msra.mxu0 %v427
        %467 = vmatpush.xpose.msra.mxu0 %v424
        %468 = vmatpush.xpose.msra.mxu0 %v421
        %469 = vmatpush.xpose.msra.mxu0 %v418
        %470 = vmatpush.xpose.msra.mxu0 %v415
        %471 = vmatpush.xpose.msra.mxu0 %v412
        %472 = vmatpush.xpose.msra.mxu0 %v409
        %473 = vmatpush.xpose.msra.mxu0 %v406
        %474 = vmatpush.xpose.msra.mxu0 %v403
        %475 = vmatpush.xpose.msra.mxu0 %v400
        %476 = vmatpush.xpose.msra.mxu0 %v397
        %477 = vmatpush.xpose.msra.mxu0 %v394
        %478 = vmatpush.xpose.msra.mxu0 %v391
        %479 = vmatpush.xpose.msra.mxu0 %v388
        %480 = vmatmul.f32.gmra.mxu0 %v328
        %v481 = vpop.f32.mrf.mxu0
        %v482 = vadd.f32 0.0, %v481
        %483 = vmatmul.f32.gmra.mxu0 %v331
        %v484 = vpop.f32.mrf.mxu0
        %v485 = vadd.f32 0.0, %v484
        %486 = vmatmul.f32.gmra.mxu0 %v334
        %v487 = vpop.f32.mrf.mxu0
        %v488 = vadd.f32 0.0, %v487
        %489 = vmatmul.f32.gmra.mxu0 %v337
        %v490 = vpop.f32.mrf.mxu0
        %v491 = vadd.f32 0.0, %v490
        %492 = vdwg.mxu0
        %vm493 = vcmask 130048
        %v495 = vsel %vm493, %v301, 0
        %v498 = vsel %vm493, %v302, 0
        %v501 = vsel %vm493, %v303, 0
        %v504 = vsel %vm493, %v304, 0
        %v507 = vsel %vm493, %v237, 0
        %v510 = vsel %vm493, %v238, 0
        %v513 = vsel %vm493, %v239, 0
        %v516 = vsel %vm493, %v240, 0
        %v519 = vsel %vm493, %v241, 0
        %v522 = vsel %vm493, %v242, 0
        %v525 = vsel %vm493, %v243, 0
        %v528 = vsel %vm493, %v244, 0
        %v531 = vsel %vm493, %v245, 0
        %v534 = vsel %vm493, %v246, 0
        %v537 = vsel %vm493, %v247, 0
        %v540 = vsel %vm493, %v248, 0
        %v543 = vsel %vm493, %v249, 0
        %v546 = vsel %vm493, %v250, 0
        %v549 = vsel %vm493, %v251, 0
        %v552 = vsel %vm493, %v252, 0
        %v555 = vsel %vm493, %v253, 0
        %v558 = vsel %vm493, %v254, 0
        %v561 = vsel %vm493, %v255, 0
        %v564 = vsel %vm493, %v256, 0
        %v567 = vsel %vm493, %v257, 0
        %v570 = vsel %vm493, %v258, 0
        %v573 = vsel %vm493, %v259, 0
        %v576 = vsel %vm493, %v260, 0
        %v579 = vsel %vm493, %v261, 0
        %v582 = vsel %vm493, %v262, 0
        %v585 = vsel %vm493, %v263, 0
        %v588 = vsel %vm493, %v264, 0
        %v591 = vsel %vm493, %v265, 0
        %v594 = vsel %vm493, %v266, 0
        %v597 = vsel %vm493, %v267, 0
        %v600 = vsel %vm493, %v268, 0
        %602 = vmatpush.xpose.msra.mxu0 %v552
        %603 = vmatpush.xpose.msra.mxu0 %v549
        %604 = vmatpush.xpose.msra.mxu0 %v546
        %605 = vmatpush.xpose.msra.mxu0 %v543
        %606 = vmatpush.xpose.msra.mxu0 %v540
        %607 = vmatpush.xpose.msra.mxu0 %v537
        %608 = vmatpush.xpose.msra.mxu0 %v534
        %609 = vmatpush.xpose.msra.mxu0 %v531
        %610 = vmatpush.xpose.msra.mxu0 %v528
        %611 = vmatpush.xpose.msra.mxu0 %v525
        %612 = vmatpush.xpose.msra.mxu0 %v522
        %613 = vmatpush.xpose.msra.mxu0 %v519
        %614 = vmatpush.xpose.msra.mxu0 %v516
        %615 = vmatpush.xpose.msra.mxu0 %v513
        %616 = vmatpush.xpose.msra.mxu0 %v510
        %617 = vmatpush.xpose.msra.mxu0 %v507
        %618 = vmatmul.f32.gmra.mxu0 %v495
        %v619 = vpop.f32.mrf.mxu0
        %v620 = vadd.f32 %v453, %v619
        %621 = vmatmul.f32.gmra.mxu0 %v498
        %v622 = vpop.f32.mrf.mxu0
        %v623 = vadd.f32 %v456, %v622
        %624 = vmatmul.f32.gmra.mxu0 %v501
        %v625 = vpop.f32.mrf.mxu0
        %v626 = vadd.f32 %v459, %v625
        %627 = vmatmul.f32.gmra.mxu0 %v504
        %v628 = vpop.f32.mrf.mxu0
        %v629 = vadd.f32 %v462, %v628
        %630 = vdwg.mxu0
        %631 = vmatpush.xpose.msra.mxu0 %v600
        %632 = vmatpush.xpose.msra.mxu0 %v597
        %633 = vmatpush.xpose.msra.mxu0 %v594
        %634 = vmatpush.xpose.msra.mxu0 %v591
        %635 = vmatpush.xpose.msra.mxu0 %v588
        %636 = vmatpush.xpose.msra.mxu0 %v585
        %637 = vmatpush.xpose.msra.mxu0 %v582
        %638 = vmatpush.xpose.msra.mxu0 %v579
        %639 = vmatpush.xpose.msra.mxu0 %v576
        %640 = vmatpush.xpose.msra.mxu0 %v573
        %641 = vmatpush.xpose.msra.mxu0 %v570
        %642 = vmatpush.xpose.msra.mxu0 %v567
        %643 = vmatpush.xpose.msra.mxu0 %v564
        %644 = vmatpush.xpose.msra.mxu0 %v561
        %645 = vmatpush.xpose.msra.mxu0 %v558
        %646 = vmatpush.xpose.msra.mxu0 %v555
        %647 = vmatmul.f32.gmra.mxu0 %v495
        %v648 = vpop.f32.mrf.mxu0
        %v649 = vadd.f32 %v482, %v648
        %650 = vmatmul.f32.gmra.mxu0 %v498
        %v651 = vpop.f32.mrf.mxu0
        %v652 = vadd.f32 %v485, %v651
        %653 = vmatmul.f32.gmra.mxu0 %v501
        %v654 = vpop.f32.mrf.mxu0
        %v655 = vadd.f32 %v488, %v654
        %656 = vmatmul.f32.gmra.mxu0 %v504
        %v657 = vpop.f32.mrf.mxu0
        %v658 = vadd.f32 %v491, %v657
        %659 = vdwg.mxu0
        %661 = vset.pattern.permute.xlu0 0
        %662 = vperm.xlu0 %661, %v309
        %v663 = vpop.permute.xlu0 %662
        %666 = vset.pattern.permute.xlu0 0
        %667 = vperm.xlu0 %666, %v310
        %v668 = vpop.permute.xlu0 %667
        %671 = vset.pattern.permute.xlu0 0
        %672 = vperm.xlu0 %671, %v311
        %v673 = vpop.permute.xlu0 %672
        %676 = vset.pattern.permute.xlu0 0
        %677 = vperm.xlu0 %676, %v312
        %v678 = vpop.permute.xlu0 %677
        %v680 = vadd.f32 %v620, %v663
        %v681 = vadd.f32 %v649, %v663
        %v682 = vadd.f32 %v623, %v668
        %v683 = vadd.f32 %v652, %v668
        %v684 = vadd.f32 %v626, %v673
        %v685 = vadd.f32 %v655, %v673
        %v686 = vadd.f32 %v629, %v678
        %v687 = vadd.f32 %v658, %v678
        %v688 = vtanh.pop %v680
        %v689 = vtanh.pop %v681
        %v690 = vtanh.pop %v682
        %v691 = vtanh.pop %v683
        %v692 = vtanh.pop %v684
        %v693 = vtanh.pop %v685
        %v694 = vtanh.pop %v686
        %v695 = vtanh.pop %v687
        %697 = vset.pattern.permute.xlu0 0
        %698 = vperm.xlu0 %697, %v317
        %v699 = vpop.permute.xlu0 %698
        %702 = vset.pattern.permute.xlu0 0
        %703 = vperm.xlu0 %702, %v318
        %v704 = vpop.permute.xlu0 %703
        %707 = vset.pattern.permute.xlu0 0
        %708 = vperm.xlu0 %707, %v319
        %v709 = vpop.permute.xlu0 %708
        %712 = vset.pattern.permute.xlu0 0
        %713 = vperm.xlu0 %712, %v320
        %v714 = vpop.permute.xlu0 %713
        %vm716 = vcmask 261120
        %v718 = vsel %vm716, %v313, 0
        %v721 = vsel %vm716, %v314, 0
        %v724 = vsel %vm716, %v315, 0
        %v727 = vsel %vm716, %v316, 0
        %729 = vmatpush.msra.mxu0 0.0
        %730 = vmatpush.msra.mxu0 0.0
        %731 = vmatpush.msra.mxu0 0.0
        %732 = vmatpush.msra.mxu0 0.0
        %733 = vmatpush.msra.mxu0 0.0
        %734 = vmatpush.msra.mxu0 0.0
        %735 = vmatpush.msra.mxu0 0.0
        %736 = vmatpush.msra.mxu0 0.0
        %737 = vmatpush.msra.mxu0 0.0
        %738 = vmatpush.msra.mxu0 0.0
        %739 = vmatpush.msra.mxu0 0.0
        %740 = vmatpush.msra.mxu0 0.0
        %741 = vmatpush.msra.mxu0 %v694
        %742 = vmatpush.msra.mxu0 %v692
        %743 = vmatpush.msra.mxu0 %v690
        %744 = vmatpush.msra.mxu0 %v688
        %745 = vmatmul.f32.gmra.mxu0 %v718
        %v746 = vpop.f32.mrf.mxu0
        %v747 = vadd.f32 %v699, %v746
        %748 = vmatmul.f32.gmra.mxu0 %v721
        %v749 = vpop.f32.mrf.mxu0
        %v750 = vadd.f32 %v704, %v749
        %751 = vmatmul.f32.gmra.mxu0 %v724
        %v752 = vpop.f32.mrf.mxu0
        %v753 = vadd.f32 %v709, %v752
        %754 = vmatmul.f32.gmra.mxu0 %v727
        %v755 = vpop.f32.mrf.mxu0
        %v756 = vadd.f32 %v714, %v755
        %757 = vdwg.mxu0
        %758 = vmatpush.msra.mxu0 0.0
        %759 = vmatpush.msra.mxu0 0.0
        %760 = vmatpush.msra.mxu0 0.0
        %761 = vmatpush.msra.mxu0 0.0
        %762 = vmatpush.msra.mxu0 0.0
        %763 = vmatpush.msra.mxu0 0.0
        %764 = vmatpush.msra.mxu0 0.0
        %765 = vmatpush.msra.mxu0 0.0
        %766 = vmatpush.msra.mxu0 0.0
        %767 = vmatpush.msra.mxu0 0.0
        %768 = vmatpush.msra.mxu0 0.0
        %769 = vmatpush.msra.mxu0 0.0
        %770 = vmatpush.msra.mxu0 %v695
        %771 = vmatpush.msra.mxu0 %v693
        %772 = vmatpush.msra.mxu0 %v691
        %773 = vmatpush.msra.mxu0 %v689
        %774 = vmatmul.f32.gmra.mxu0 %v718
        %v775 = vpop.f32.mrf.mxu0
        %v776 = vadd.f32 %v699, %v775
        %777 = vmatmul.f32.gmra.mxu0 %v721
        %v778 = vpop.f32.mrf.mxu0
        %v779 = vadd.f32 %v704, %v778
        %780 = vmatmul.f32.gmra.mxu0 %v724
        %v781 = vpop.f32.mrf.mxu0
        %v782 = vadd.f32 %v709, %v781
        %783 = vmatmul.f32.gmra.mxu0 %v727
        %v784 = vpop.f32.mrf.mxu0
        %v785 = vadd.f32 %v714, %v784
        %786 = vdwg.mxu0
        %v787 = vtanh.pop %v747
        %v788 = vtanh.pop %v776
        %v789 = vtanh.pop %v750
        %v790 = vtanh.pop %v779
        %v791 = vtanh.pop %v753
        %v792 = vtanh.pop %v782
        %v793 = vtanh.pop %v756
        %v794 = vtanh.pop %v785
        %796 = vset.pattern.permute.xlu0 0
        %797 = vperm.xlu0 %796, %v321
        %v798 = vpop.permute.xlu0 %797
        %801 = vset.pattern.permute.xlu0 0
        %802 = vperm.xlu0 %801, %v322
        %v803 = vpop.permute.xlu0 %802
        %806 = vset.pattern.permute.xlu0 0
        %807 = vperm.xlu0 %806, %v323
        %v808 = vpop.permute.xlu0 %807
        %811 = vset.pattern.permute.xlu0 0
        %812 = vperm.xlu0 %811, %v324
        %v813 = vpop.permute.xlu0 %812
        %v815 = vmul.f32 %v787, %v798
        %v816 = vmul.f32 %v788, %v798
        %v817 = vmul.f32 %v789, %v803
        %v818 = vmul.f32 %v790, %v803
        %v819 = vmul.f32 %v791, %v808
        %v820 = vmul.f32 %v792, %v808
        %v821 = vmul.f32 %v793, %v813
        %v822 = vmul.f32 %v794, %v813
        %v823 = vadd.f32 %v815, %v817
        %v824 = vadd.f32 %v823, %v819
        %v825 = vadd.f32 %v824, %v821
        %v826 = vrot.slane %v825, 4
        %v827 = vadd.f32 %v825, %v826
        %v828 = vrot.slane %v827, 2
        %v829 = vadd.f32 %v827, %v828
        %v830 = vrot.slane %v829, 1
        %v831 = vadd.f32 %v829, %v830
        %v832 = vadd.f32 %v816, %v818
        %v833 = vadd.f32 %v832, %v820
        %v834 = vadd.f32 %v833, %v822
        %v835 = vrot.slane %v834, 4
        %v836 = vadd.f32 %v834, %v835
        %v837 = vrot.slane %v836, 2
        %v838 = vadd.f32 %v836, %v837
        %v839 = vrot.slane %v838, 1
        %v840 = vadd.f32 %v838, %v839
        %842 = vset.pattern.permute.xlu0 0
        %843 = vperm.xlu0 %842, %v325
        %v844 = vpop.permute.xlu0 %843
        %v846 = vadd.f32 %v831, %v844
        %v847 = vadd.f32 %v840, %v844
        %v850 = vrot.slane %v847, 7
        %vm851 = vcmask 1040384
        %v852 = vsel %vm851, %v846, %v850
        %v854 = vlaneseq
        %vm855 = vcmp.ge.s32.totalorder %v854, 0
        %vm856 = vcmp.lt.s32.totalorder %v854, 256
        %vm857 = vmand %vm855, %vm856
        %858 = vst.msk [vmem:[%s204] sm:$0x3] %vm857, %v852
        %s859 = sand.u32 %s98, 1
        %s860 = scalar_lea.sflag [#allocation3], %s859
        %s861 = sand.u32 %s98, 1
        %s862 = smul.addr %s861, 2
        %s863 = scalar_lea.vmem [#allocation2], %s862
        // Predicated region
        $region33: #{tpu_custom_call.1} parent=31 // pred_check
          %p864 = pneg %p108
        $region34: #{tpu_custom_call.1} parent=31 // pred_check_branch
          %866 = sbr.rel (%p864) target = $region36
        $region35: #{tpu_custom_call.1} parent=31 // pred_region
          %s867 = smul.u32 2, %s17
          %s868 = ssub.s32 3, %s867
          %p869 = scmp.lt.s32.totalorder %s868, 2
          %s870 = scalar_select %p869, %s868, 2
          %s871 = ssub.s32 2, %s870
          %s872 = sshll.u32 %s871, 4
          %873 = vsyncadd %s860, %s872
          %p874 = scmp.ne.s32.totalorder 0, %s870
          %s875 = scalar_lea.hbm %s3, %s867
          %s876 = sshll.u32 %s870, 4
          %s877 = sshll.u32 %s863, 4
          %s878 = int_to_ptr.vmem [resolvable:$true] %s877
          %s879 = sshll.u32 %s875, 4
          %s880 = int_to_ptr.hbm [resolvable:$true] %s879
          %882 = dma.vmem_to_hbm [thread:$0]  (%p874), %s878, %s876, %s880, %s860
        $region36: #{tpu_custom_call.1} parent=31 // pred_fallthru
          _
      $region32: #{tpu_custom_call.1} parent=5 // pred_fallthru
        _
      %p883 = scmp.le.s32.totalorder 2, %s12
      // Predicated region
      $region37: #{tpu_custom_call.1} parent=5 // pred_check
        %p884 = pneg %p883
      $region38: #{tpu_custom_call.1} parent=5 // pred_check_branch
        %886 = sbr.rel (%p884) target = $region40
      $region39: #{tpu_custom_call.1} parent=5 // pred_region
        %s887 = ssub.s32 %s12, 2
        // Predicated region
        $region41: #{tpu_custom_call.1} parent=39 // pred_check
          %p888 = pneg %p114
        $region42: #{tpu_custom_call.1} parent=39 // pred_check_branch
          %890 = sbr.rel (%p888) target = $region44
        $region43: #{tpu_custom_call.1} parent=39 // pred_region
          %s891 = sand.u32 %s99, 1
          %s892 = scalar_lea.sflag [#allocation3], %s891
          %s893 = sand.u32 %s99, 1
          %s894 = smul.addr %s893, 2
          %s895 = scalar_lea.vmem [#allocation2], %s894
          %897 = dma.done %s892, 32
        $region44: #{tpu_custom_call.1} parent=39 // pred_fallthru
          _
      $region40: #{tpu_custom_call.1} parent=5 // pred_fallthru
        _
    $region6: #{tpu_custom_call.1} parent=1 // loop_footer
      %s16 = sadd.s32 1, %s12
    $region7: #{tpu_custom_call.1} parent=1 // loop_footer_branch
      %11 = sbr.rel target = $region3
    $region8: #{tpu_custom_call.1} parent=1 // loop_exit
      _
    %898 = vsyncpa [#allocation3], 1
    %s899 = scalar_lea.sflag [#allocation3], 1
    %900 = vsyncpa %s899, 1

</llo_original>
